<compile_context>
chip_gen: v7x
topology: tpu7x:2x2x1
jax: 0.10.0
libtpu: 0.0.40
codegen_flags: <defaults>
</compile_context>

<pallas_src>
import functools

import jax
import jax.numpy as jnp
from jax import lax
from jax.experimental import pallas as pl
from jax.experimental.pallas import tpu as pltpu


# ----------------------------------------------------------------------------
# Pallas kernel: one batch tile per grid step, batch on lanes.
#   onehot  : (Vu+Vv+Vw, Bt)   combined one-hot (3 hot rows / sample)  [VPU]
#   feats   = table @ onehot   (2*d2*d3 + d3, Bt)   fused gather        [MXU]
#     feats[0:d23]        = sigmoid(U@G_flat)[u_idx].T   (precomputed table)
#     feats[d23:2*d23]    = V[v_idx, k] repeated along d3
#     feats[2*d23:+d3]    = W[w_idx].T
#   g  = sigmoid( sum_k  v_rep * x )        (d3, Bt)   segmented sum    [VPU+EUP]
#   pred = sum_j w * g                      (1, Bt)    lane-dense store
# ----------------------------------------------------------------------------
def _ml2_linear_kernel(uidx_ref, vidx_ref, widx_ref, table_ref, o_ref, *, d2, d3):
    bt = uidx_ref.shape[-1]
    vtot = table_ref.shape[-1]
    d23 = d2 * d3

    # Combined one-hot: v/w indices were pre-offset into their vocab sections,
    # so the three hot rows per sample are disjoint.
    iota = lax.broadcasted_iota(jnp.int32, (vtot, bt), 0)
    onehot = ((iota == uidx_ref[...]) |
              (iota == vidx_ref[...]) |
              (iota == widx_ref[...])).astype(jnp.float32)            # (Vtot, Bt)

    # Single fused gather matmul against the block-diagonal table (f32 MXU).
    feats = jnp.dot(table_ref[...], onehot,
                    preferred_element_type=jnp.float32)               # (F, Bt)

    # 8-aligned sublane slices (free views): d23 = 64, 2*d23 = 128.
    x     = feats[0:d23, :]            # sigmoid(u @ G_flat), row f = k*d3 + j
    v_rep = feats[d23:2 * d23, :]      # v[k] repeated along j
    w     = feats[2 * d23:2 * d23 + d3, :]                            # (d3, Bt)

    # Segmented sum over d2 (replaces the old S-selection matmul): pure VPU.
    g_pre = (v_rep * x).reshape(d2, d3, bt)
    g = jax.nn.sigmoid(jnp.sum(g_pre, axis=0))                        # (d3, Bt)

    # Final contraction over d3: 8-sublane reduce, lane-dense (1, Bt) store.
    o_ref[...] = jnp.sum(w * g, axis=0, keepdims=True)


def ml2_linear_forward(u_idx, v_idx, w_idx, U, V, W, G, *, block_b=None):
    """u_idx/v_idx/w_idx: (B,) int; U:(Vu,d1) V:(Vv,d2) W:(Vw,d3);
    G:(d1,d2,d3) reconstructed Tucker core.  Returns pred: (B,) float32."""
    B = u_idx.shape[0]
    vocab_u, d1 = U.shape
    vocab_v, d2 = V.shape
    vocab_w, d3 = W.shape
    assert G.shape == (d1, d2, d3)
    d23 = d2 * d3
    # Keep the in-kernel slice boundaries sublane(8)-aligned for free views.
    assert d23 % 8 == 0 and d3 % 8 == 0, "d2*d3 and d3 must be multiples of 8"

    # ---- parameter-only precompute (batch independent, exact folding) ----
    # x = sigmoid(u @ G_flat) depends only on u_idx -> fold into a table.
    G_flat = G.reshape(d1, d23).astype(jnp.float32)
    X_tableT = jax.nn.sigmoid(U.astype(jnp.float32) @ G_flat).T            # (d23, Vu)
    # v repeated along d3: row f = k*d3 + j holds V[:, k].
    V_repT = jnp.repeat(V.T.astype(jnp.float32), d3, axis=0)               # (d23, Vv)
    W_T = W.T.astype(jnp.float32)                                          # (d3,  Vw)

    F = 2 * d23 + d3
    vtot = vocab_u + vocab_v + vocab_w
    table = jnp.zeros((F, vtot), jnp.float32)
    table = table.at[0:d23, 0:vocab_u].set(X_tableT)
    table = table.at[d23:2 * d23, vocab_u:vocab_u + vocab_v].set(V_repT)
    table = table.at[2 * d23:, vocab_u + vocab_v:].set(W_T)
    # NOTE: if vocab sizes ever grow large, single-buffer this constant table
    # (pipeline_mode=pl.Buffered(1)) or move it to pl.ANY with a manual DMA so
    # v7x's 64 MiB VMEM is not charged twice.  Tiny here, so not needed.

    # ---- batch tiling: batch sits on lanes (128-dense), >=2 parallel steps ----
    if block_b is None:
        block_b = max(128, min(2048, (B // 2) // 128 * 128))
    assert block_b % 128 == 0, "block_b must be a multiple of 128 (lane-dense)"
    n_tiles = pl.cdiv(B, block_b)
    b_pad = n_tiles * block_b

    def prep(idx):
        idx = idx.reshape(1, -1).astype(jnp.int32)
        if b_pad != B:
            idx = jnp.pad(idx, ((0, 0), (0, b_pad - B)))   # padded rows sliced off
        return idx

    uidx = prep(u_idx)
    vidx = prep(v_idx) + vocab_u                 # offset into the V section
    widx = prep(w_idx) + vocab_u + vocab_v       # offset into the W section

    kernel = functools.partial(_ml2_linear_kernel, d2=d2, d3=d3)

    cost = pl.CostEstimate(
        flops=int(2 * F * vtot * b_pad + 4 * d23 * b_pad),
        transcendentals=int(d3 * b_pad),
        bytes_accessed=int(3 * 4 * b_pad + 4 * F * vtot + 4 * b_pad),
    )

    out = pl.pallas_call(
        kernel,
        out_shape=jax.ShapeDtypeStruct((1, b_pad), jnp.float32),
        grid_spec=pltpu.PrefetchScalarGridSpec(
            num_scalar_prefetch=0,
            grid=(n_tiles,),
            in_specs=[
                pl.BlockSpec((1, block_b), lambda i: (0, i)),   # u_idx (lane-major)
                pl.BlockSpec((1, block_b), lambda i: (0, i)),   # v_idx + Vu
                pl.BlockSpec((1, block_b), lambda i: (0, i)),   # w_idx + Vu + Vv
                pl.BlockSpec((F, vtot), lambda i: (0, 0)),      # block-diag table
            ],
            out_specs=pl.BlockSpec((1, block_b), lambda i: (0, i)),
        ),
        compiler_params=pltpu.CompilerParams(
            dimension_semantics=("parallel",)),
        cost_estimate=cost,
    )(uidx, vidx, widx, table)

    return out[0, :B]


# ----------------------------------------------------------------------------
# Parameter setup (deterministic, synthetic) + plain-JAX reference
# ----------------------------------------------------------------------------
def xavier_normal(key, shape):
    fan_in, fan_out = shape[1], shape[0]
    std = jnp.sqrt(2.0 / (fan_in + fan_out))
    return std * jax.random.normal(key, shape, dtype=jnp.float32)


def build_params(key, shape, rank, core):
    ks = jax.random.split(key, 7)
    p = {}
    p["U1"] = xavier_normal(ks[0], (rank[0], core[0]))
    p["V1"] = xavier_normal(ks[1], (rank[1], core[1]))
    p["W1"] = xavier_normal(ks[2], (rank[2], core[2]))
    p["U"] = xavier_normal(ks[3], (shape[0], rank[0]))
    p["V"] = xavier_normal(ks[4], (shape[1], rank[1]))
    p["W"] = xavier_normal(ks[5], (shape[2], rank[2]))
    # mimic padding_idx=0 (row 0 zero)
    for name in ("U1", "V1", "W1", "U", "V", "W"):
        p[name] = p[name].at[0].set(0.0)
    p["G1"] = jax.random.uniform(ks[6], (core[0], core[1], core[2]),
                                 minval=-1.0, maxval=1.0, dtype=jnp.float32)
    return p


def tucker_core(p):
    # res = mode_dot(G1, U1, 0); mode_dot(res, V1, 1); mode_dot(res, W1, 2)
    # (parameter-only, batch independent -> plain JAX, like the module)
    return jnp.einsum("abc,ia,jb,kc->ijk", p["G1"], p["U1"], p["V1"], p["W1"])


def reference_forward(p, u_idx, v_idx, w_idx):
    d1, d2, d3 = p["U"].shape[1], p["V"].shape[1], p["W"].shape[1]
    u = p["U"][u_idx]                                   # (B, d1)
    v = p["V"][v_idx]                                   # (B, d2)
    w = p["W"][w_idx]                                   # (B, d3)
    G = tucker_core(p)
    x = jax.nn.sigmoid(u @ G.reshape(d1, -1)).reshape(-1, d2, d3)
    g = jax.nn.sigmoid(jnp.einsum("bd,bde->be", v, x))  # (B, d3)
    return jnp.sum(w * g, axis=-1)                      # (B,)


if __name__ == "__main__":
    key = jax.random.PRNGKey(0)
    shape = (10, 12, 14)     # vocab sizes of U, V, W embeddings
    rank = (8, 8, 8)         # d1, d2, d3
    core = (4, 4, 4)         # Tucker core dims
    B = 1024                 # -> 2 parallel batch tiles of 512 (both v7x TCs)

    pkey, ikey = jax.random.split(key)
    params = build_params(pkey, shape, rank, core)

    k1, k2, k3 = jax.random.split(ikey, 3)
    u_idx = jax.random.randint(k1, (B,), 0, shape[0])
    v_idx = jax.random.randint(k2, (B,), 0, shape[1])
    w_idx = jax.random.randint(k3, (B,), 0, shape[2])

    G = tucker_core(params)  # parameter-only Tucker reconstruction (plain JAX)

    pred = ml2_linear_forward(u_idx, v_idx, w_idx,
                              params["U"], params["V"], params["W"], G)
    pred = jax.block_until_ready(pred)

    ref = reference_forward(params, u_idx, v_idx, w_idx)
    assert pred.shape == (B,)
    # all-f32 path now -> tight tolerance
    assert jnp.allclose(pred, ref, atol=1e-4, rtol=1e-4), float(
        jnp.max(jnp.abs(pred - ref)))

    print("KERNEL_OK")
</pallas_src>

<mosaic_0001>
module attributes {stable_mosaic.version = 11 : i64} {
  func.func @_ml2_linear_kernel(%arg0: i32, %arg1: memref<1x512xi32, #tpu.memory_space<vmem>>, %arg2: memref<1x512xi32, #tpu.memory_space<vmem>>, %arg3: memref<1x512xi32, #tpu.memory_space<vmem>>, %arg4: memref<136x36xf32, #tpu.memory_space<vmem>>, %arg5: memref<1x512xf32, #tpu.memory_space<vmem>>) attributes {dimension_semantics = [#tpu.dimension_semantics<parallel>], iteration_bounds = array<i64: 2>, scalar_prefetch = 0 : i64, scratch_operands = 0 : i64, tpu.core_type = #tpu.core_type<tc>, window_params = [{transform_indices = @transform_0, window_bounds = array<i64: 1, 512>}, {transform_indices = @transform_1, window_bounds = array<i64: 1, 512>}, {transform_indices = @transform_2, window_bounds = array<i64: 1, 512>}, {pipeline_mode = #tpu.pipeline_mode<synchronous>, transform_indices = @transform_3, window_bounds = array<i64: 136, 36>}, {transform_indices = @transform_4, window_bounds = array<i64: 1, 512>}]} {
    %0 = tpu.iota {dimensions = array<i32: 0>} : vector<36x512xi32>
    %c0 = arith.constant 0 : index
    %c0_0 = arith.constant 0 : index
    %1 = vector.load %arg1[%c0, %c0_0] : memref<1x512xi32, #tpu.memory_space<vmem>>, vector<1x512xi32>
    %2 = vector.broadcast %1 : vector<1x512xi32> to vector<36x512xi32>
    %3 = arith.cmpi eq, %0, %2 : vector<36x512xi32>
    %c0_1 = arith.constant 0 : index
    %c0_2 = arith.constant 0 : index
    %4 = vector.load %arg2[%c0_1, %c0_2] : memref<1x512xi32, #tpu.memory_space<vmem>>, vector<1x512xi32>
    %5 = vector.broadcast %4 : vector<1x512xi32> to vector<36x512xi32>
    %6 = arith.cmpi eq, %0, %5 : vector<36x512xi32>
    %7 = arith.ori %3, %6 : vector<36x512xi1>
    %c0_3 = arith.constant 0 : index
    %c0_4 = arith.constant 0 : index
    %8 = vector.load %arg3[%c0_3, %c0_4] : memref<1x512xi32, #tpu.memory_space<vmem>>, vector<1x512xi32>
    %9 = vector.broadcast %8 : vector<1x512xi32> to vector<36x512xi32>
    %10 = arith.cmpi eq, %0, %9 : vector<36x512xi32>
    %11 = arith.ori %7, %10 : vector<36x512xi1>
    %12 = arith.extui %11 : vector<36x512xi1> to vector<36x512xi32>
    %13 = arith.sitofp %12 : vector<36x512xi32> to vector<36x512xf32>
    %c0_5 = arith.constant 0 : index
    %c0_6 = arith.constant 0 : index
    %14 = vector.load %arg4[%c0_5, %c0_6] : memref<136x36xf32, #tpu.memory_space<vmem>>, vector<136x36xf32>
    %cst = arith.constant dense<0.000000e+00> : vector<136x512xf32>
    %15 = tpu.matmul %14, %13, %cst {dimension_numbers = #tpu.dot_dimension_numbers<[1], [0], [0], [1], [0, 0, 1, 1], [], []>} : vector<136x36xf32>, vector<36x512xf32>, vector<136x512xf32> -> vector<136x512xf32>
    %16 = vector.extract_strided_slice %15 {offsets = [0, 0], sizes = [64, 512], strides = [1, 1]} : vector<136x512xf32> to vector<64x512xf32>
    %17 = vector.extract_strided_slice %15 {offsets = [64, 0], sizes = [64, 512], strides = [1, 1]} : vector<136x512xf32> to vector<64x512xf32>
    %18 = vector.extract_strided_slice %15 {offsets = [128, 0], sizes = [8, 512], strides = [1, 1]} : vector<136x512xf32> to vector<8x512xf32>
    %19 = arith.mulf %17, %16 : vector<64x512xf32>
    %20 = vector.shape_cast %19 : vector<64x512xf32> to vector<8x8x512xf32>
    %cst_7 = arith.constant dense<0.000000e+00> : vector<8x512xf32>
    %21 = vector.multi_reduction <add>, %20, %cst_7 [0] : vector<8x8x512xf32> to vector<8x512xf32>
    %22 = arith.negf %21 : vector<8x512xf32>
    %23 = math.exp %22 : vector<8x512xf32>
    %cst_8 = arith.constant 1.000000e+00 : f32
    %24 = vector.broadcast %cst_8 : f32 to vector<8x512xf32>
    %25 = arith.addf %24, %23 : vector<8x512xf32>
    %26 = arith.divf %24, %25 : vector<8x512xf32>
    %27 = arith.mulf %18, %26 : vector<8x512xf32>
    %cst_9 = arith.constant dense<0.000000e+00> : vector<512xf32>
    %28 = vector.multi_reduction <add>, %27, %cst_9 [0] : vector<8x512xf32> to vector<512xf32>
    %29 = vector.shape_cast %28 : vector<512xf32> to vector<1x512xf32>
    %c0_10 = arith.constant 0 : index
    %c0_11 = arith.constant 0 : index
    %30 = vector.load %arg5[%c0_10, %c0_11] : memref<1x512xf32, #tpu.memory_space<vmem>>, vector<1x512xf32>
    tpu.vector_store %arg5[%c0_10, %c0_11], %29 {strides = array<i32>} : memref<1x512xf32, #tpu.memory_space<vmem>>, vector<1x512xf32>,
    return
  }
  func.func @transform_0(%arg0: i32) -> (i32, i32) {
    %c0_i32 = arith.constant 0 : i32
    %c0_i32_0 = arith.constant 0 : i32
    return %c0_i32, %arg0 : i32, i32
  }
  func.func @transform_1(%arg0: i32) -> (i32, i32) {
    %c0_i32 = arith.constant 0 : i32
    %c0_i32_0 = arith.constant 0 : i32
    return %c0_i32, %arg0 : i32, i32
  }
  func.func @transform_2(%arg0: i32) -> (i32, i32) {
    %c0_i32 = arith.constant 0 : i32
    %c0_i32_0 = arith.constant 0 : i32
    return %c0_i32, %arg0 : i32, i32
  }
  func.func @transform_3(%arg0: i32) -> (i32, i32) {
    %c0_i32 = arith.constant 0 : i32
    %c0_i32_0 = arith.constant 0 : i32
    %c0_i32_1 = arith.constant 0 : i32
    return %c0_i32, %c0_i32_0 : i32, i32
  }
  func.func @transform_4(%arg0: i32) -> (i32, i32) {
    %c0_i32 = arith.constant 0 : i32
    %c0_i32_0 = arith.constant 0 : i32
    return %c0_i32, %arg0 : i32, i32
  }
}

</mosaic_0001>

<llo_original>
// kernel: tpu_custom_call.1
$region0: #{tpu_custom_call.1}
  #allocation0 [shape = 'u32[]', space=smem, size = 0x4, offset = 0x4, fixed_abs, tag = 'smem constant byte address 0x4 - core index']
  #allocation1 [shape = 'u32[144,128]{1,0:T(1,128)}', space=vmem, size = 0x12000, scoped, tag = 'internal scratch']
  %s0 = inlined_call_operand.vmem [shape: s32[1,1024], index: 0, kind: input, shape index: {}]
  %s1 = inlined_call_operand.vmem [shape: s32[1,1024], index: 1, kind: input, shape index: {}]
  %s2 = inlined_call_operand.vmem [shape: s32[1,1024], index: 2, kind: input, shape index: {}]
  %s3 = inlined_call_operand.vmem [shape: f32[136,36], index: 3, kind: input, shape index: {}]
  %s4 = inlined_call_operand.hbm [shape: f32[1,1024], index: 4, kind: output, shape index: {}]
  %s5 = sld [smem:[#allocation0]]
  $region49: #{tpu_custom_call.1} parent=0
    _
  %s7 = ssub.s32 1, %s5
  %s8 = scalar_select 0, %s7, %s5
  $region1: #{tpu_custom_call.1} parent=0
    #allocation2 [shape = 'u8[4096]{0}', space=vmem, size = 0x1000, scoped, tag = 'output window, operand 0']
    #allocation3 [shape = 's32[2]{0}', space=sflag, size = 0x8, scoped, tag = 'scoped memory for tpu_custom_call.1']
    %9 = vsyncpa [#allocation3], 0
    %s10 = scalar_lea.sflag [#allocation3], 1
    %11 = vsyncpa %s10, 0
    loop: start=0, step=1, limit=4
    $region2: #{tpu_custom_call.1} parent=1 // loop_pre_header
      _
    $region3: #{tpu_custom_call.1} parent=1 // loop_header
      %s13 = sphi 0, %s17
      %p14 = scmp.ge.s32.totalorder %s13, 4
      %s23 = sphi 0, %s25
      %s26 = sphi 0, %s23
      %s27 = sphi 0, %s26
      %s43 = sphi 0, %s27
      %s49 = sphi 0, %s51
      %s52 = sphi 0, %s49
      %s53 = sphi 0, %s52
      %s69 = sphi 0, %s53
      %s75 = sphi 0, %s77
      %s78 = sphi 0, %s75
      %s79 = sphi 0, %s78
      %s95 = sphi 0, %s79
      %s99 = sphi 0, %s99
      %s101 = sphi 0, %s99
      %s102 = sphi 0, %s101
      %s116 = sphi 0, %s102
      %s122 = sphi 0, %s124
      %s125 = sphi 0, %s122
      %s126 = sphi 0, %s125
      %s142 = sphi 0, %s126
    $region4: #{tpu_custom_call.1} parent=1 // loop_header_branch
      %16 = sbr.rel (%p14) target = $region8
    $region5: #{tpu_custom_call.1} parent=1 // loop_body
      %s18 = ssub.s32 %s13, 1
      %s19 = ssub.s32 %s13, 2
      %s20 = sadd.s32 %s13, 1
      %s21 = ssub.s32 %s13, %s20
      %p22 = scmp.eq.s32.totalorder %s21, 0
      %s24 = sadd.s32 %s23, 1
      %s25 = scalar_select %p22, %s23, %s24
      %p28 = pneg %p22
      %p29 = scmp.eq.s32.totalorder %s13, 1
      %p30 = por %p28, %p29
      %p31 = scmp.ne.s32.totalorder %s23, %s26
      %p32 = scmp.eq.s32.totalorder %s13, 0
      %p33 = por %p31, %p32
      %p34 = scmp.ne.s32.totalorder %s23, %s26
      %p35 = scmp.eq.s32.totalorder %s18, 1
      %p36 = por %p34, %p35
      %p37 = scmp.ne.s32.totalorder %s26, %s27
      %p38 = scmp.eq.s32.totalorder %s18, 0
      %p39 = por %p37, %p38
      %p40 = scmp.ne.s32.totalorder %s26, %s27
      %p41 = scmp.eq.s32.totalorder %s19, 1
      %p42 = por %p40, %p41
      %p44 = scmp.ne.s32.totalorder %s27, %s43
      %p45 = scmp.eq.s32.totalorder %s19, 0
      %p46 = por %p44, %p45
      %s47 = ssub.s32 %s13, %s20
      %p48 = scmp.eq.s32.totalorder %s47, 0
      %s50 = sadd.s32 %s49, 1
      %s51 = scalar_select %p48, %s49, %s50
      %p54 = pneg %p48
      %p55 = scmp.eq.s32.totalorder %s13, 1
      %p56 = por %p54, %p55
      %p57 = scmp.ne.s32.totalorder %s49, %s52
      %p58 = scmp.eq.s32.totalorder %s13, 0
      %p59 = por %p57, %p58
      %p60 = scmp.ne.s32.totalorder %s49, %s52
      %p61 = scmp.eq.s32.totalorder %s18, 1
      %p62 = por %p60, %p61
      %p63 = scmp.ne.s32.totalorder %s52, %s53
      %p64 = scmp.eq.s32.totalorder %s18, 0
      %p65 = por %p63, %p64
      %p66 = scmp.ne.s32.totalorder %s52, %s53
      %p67 = scmp.eq.s32.totalorder %s19, 1
      %p68 = por %p66, %p67
      %p70 = scmp.ne.s32.totalorder %s53, %s69
      %p71 = scmp.eq.s32.totalorder %s19, 0
      %p72 = por %p70, %p71
      %s73 = ssub.s32 %s13, %s20
      %p74 = scmp.eq.s32.totalorder %s73, 0
      %s76 = sadd.s32 %s75, 1
      %s77 = scalar_select %p74, %s75, %s76
      %p80 = pneg %p74
      %p81 = scmp.eq.s32.totalorder %s13, 1
      %p82 = por %p80, %p81
      %p83 = scmp.ne.s32.totalorder %s75, %s78
      %p84 = scmp.eq.s32.totalorder %s13, 0
      %p85 = por %p83, %p84
      %p86 = scmp.ne.s32.totalorder %s75, %s78
      %p87 = scmp.eq.s32.totalorder %s18, 1
      %p88 = por %p86, %p87
      %p89 = scmp.ne.s32.totalorder %s78, %s79
      %p90 = scmp.eq.s32.totalorder %s18, 0
      %p91 = por %p89, %p90
      %p92 = scmp.ne.s32.totalorder %s78, %s79
      %p93 = scmp.eq.s32.totalorder %s19, 1
      %p94 = por %p92, %p93
      %p96 = scmp.ne.s32.totalorder %s79, %s95
      %p97 = scmp.eq.s32.totalorder %s19, 0
      %p98 = por %p96, %p97
      %s100 = sadd.s32 %s99, 1
      %p103 = scmp.eq.s32.totalorder %s13, 1
      %p104 = scmp.ne.s32.totalorder %s99, %s101
      %p105 = scmp.eq.s32.totalorder %s13, 0
      %p106 = por %p104, %p105
      %p107 = scmp.ne.s32.totalorder %s99, %s101
      %p108 = scmp.eq.s32.totalorder %s18, 1
      %p109 = por %p107, %p108
      %p110 = scmp.ne.s32.totalorder %s101, %s102
      %p111 = scmp.eq.s32.totalorder %s18, 0
      %p112 = por %p110, %p111
      %p113 = scmp.ne.s32.totalorder %s101, %s102
      %p114 = scmp.eq.s32.totalorder %s19, 1
      %p115 = por %p113, %p114
      %p117 = scmp.ne.s32.totalorder %s102, %s116
      %p118 = scmp.eq.s32.totalorder %s19, 0
      %p119 = por %p117, %p118
      %s120 = ssub.s32 %s13, %s20
      %p121 = scmp.eq.s32.totalorder %s120, 0
      %s123 = sadd.s32 %s122, 1
      %s124 = scalar_select %p121, %s122, %s123
      %p127 = pneg %p121
      %p128 = scmp.eq.s32.totalorder %s13, 1
      %p129 = por %p127, %p128
      %p130 = scmp.ne.s32.totalorder %s122, %s125
      %p131 = scmp.eq.s32.totalorder %s13, 0
      %p132 = por %p130, %p131
      %p133 = scmp.ne.s32.totalorder %s122, %s125
      %p134 = scmp.eq.s32.totalorder %s18, 1
      %p135 = por %p133, %p134
      %p136 = scmp.ne.s32.totalorder %s125, %s126
      %p137 = scmp.eq.s32.totalorder %s18, 0
      %p138 = por %p136, %p137
      %p139 = scmp.ne.s32.totalorder %s125, %s126
      %p140 = scmp.eq.s32.totalorder %s19, 1
      %p141 = por %p139, %p140
      %p143 = scmp.ne.s32.totalorder %s126, %s142
      %p144 = scmp.eq.s32.totalorder %s19, 0
      %p145 = por %p143, %p144
      %p146 = scmp.le.s32.totalorder 1, %s13
      %p147 = scmp.lt.s32.totalorder %s13, 3
      %p148 = pnand %p146, %p147
      %p149 = pneg %p148
      // Predicated region
      $region9: #{tpu_custom_call.1} parent=5 // pred_check
        _
      $region10: #{tpu_custom_call.1} parent=5 // pred_check_branch
        %151 = sbr.rel (%p148) target = $region12
      $region11: #{tpu_custom_call.1} parent=5 // pred_region
        %s152 = ssub.s32 %s13, 1
        // Predicated region
        $region13: #{tpu_custom_call.1} parent=11 // pred_check
          %p153 = pneg %p112
        $region14: #{tpu_custom_call.1} parent=11 // pred_check_branch
          %155 = sbr.rel (%p153) target = $region16
        $region15: #{tpu_custom_call.1} parent=11 // pred_region
          _
        $region16: #{tpu_custom_call.1} parent=11 // pred_fallthru
          _
      $region12: #{tpu_custom_call.1} parent=5 // pred_fallthru
        _
      %p156 = scmp.lt.s32.totalorder %s13, 2
      // Predicated region
      $region17: #{tpu_custom_call.1} parent=5 // pred_check
        %p157 = pneg %p156
      $region18: #{tpu_custom_call.1} parent=5 // pred_check_branch
        %159 = sbr.rel (%p157) target = $region20
      $region19: #{tpu_custom_call.1} parent=5 // pred_region
        // Predicated region
        $region21: #{tpu_custom_call.1} parent=19 // pred_check
          %p160 = pneg %p33
        $region22: #{tpu_custom_call.1} parent=19 // pred_check_branch
          %162 = sbr.rel (%p160) target = $region24
        $region23: #{tpu_custom_call.1} parent=19 // pred_region
          %s163 = smul.u32 4, %s13
          %p164 = scmp.lt.s32.totalorder %s163, 7
          %s165 = scalar_select %p164, %s163, 7
          %s166 = scalar_lea.vmem %s0, %s165
          %s167 = smul.u32 4, %s13
        $region24: #{tpu_custom_call.1} parent=19 // pred_fallthru
          _
        // Predicated region
        $region25: #{tpu_custom_call.1} parent=19 // pred_check
          %p168 = pneg %p59
        $region26: #{tpu_custom_call.1} parent=19 // pred_check_branch
          %170 = sbr.rel (%p168) target = $region28
        $region27: #{tpu_custom_call.1} parent=19 // pred_region
          %s171 = smul.u32 4, %s13
          %p172 = scmp.lt.s32.totalorder %s171, 7
          %s173 = scalar_select %p172, %s171, 7
          %s174 = scalar_lea.vmem %s1, %s173
          %s175 = smul.u32 4, %s13
        $region28: #{tpu_custom_call.1} parent=19 // pred_fallthru
          _
        // Predicated region
        $region29: #{tpu_custom_call.1} parent=19 // pred_check
          %p176 = pneg %p85
        $region30: #{tpu_custom_call.1} parent=19 // pred_check_branch
          %178 = sbr.rel (%p176) target = $region32
        $region31: #{tpu_custom_call.1} parent=19 // pred_region
          %s179 = smul.u32 4, %s13
          %p180 = scmp.lt.s32.totalorder %s179, 7
          %s181 = scalar_select %p180, %s179, 7
          %s182 = scalar_lea.vmem %s2, %s181
          %s183 = smul.u32 4, %s13
        $region32: #{tpu_custom_call.1} parent=19 // pred_fallthru
          _
      $region20: #{tpu_custom_call.1} parent=5 // pred_fallthru
        _
      %p184 = scmp.le.s32.totalorder 1, %s13
      %p185 = scmp.lt.s32.totalorder %s13, 3
      %p186 = pnand %p184, %p185
      %p187 = pneg %p186
      // Predicated region
      $region33: #{tpu_custom_call.1} parent=5 // pred_check
        _
      $region34: #{tpu_custom_call.1} parent=5 // pred_check_branch
        %189 = sbr.rel (%p186) target = $region36
      $region35: #{tpu_custom_call.1} parent=5 // pred_region
        %s190 = ssub.s32 %s13, 1
        %s191 = smul.u32 4, %s18
        %p192 = scmp.lt.s32.totalorder %s191, 7
        %s193 = scalar_select %p192, %s191, 7
        %s194 = scalar_lea.vmem %s0, %s193
        %p195 = pneg %p39
        %p196 = pneg %p36
        %s197 = smul.u32 4, %s18
        %p198 = scmp.lt.s32.totalorder %s197, 7
        %s199 = scalar_select %p198, %s197, 7
        %s200 = scalar_lea.vmem %s1, %s199
        %p201 = pneg %p65
        %p202 = pneg %p62
        %s203 = smul.u32 4, %s18
        %p204 = scmp.lt.s32.totalorder %s203, 7
        %s205 = scalar_select %p204, %s203, 7
        %s206 = scalar_lea.vmem %s2, %s205
        %p207 = pneg %p91
        %p208 = pneg %p88
        %p209 = pneg %p112
        %p210 = pneg %p109
        %p211 = pneg %p138
        %p212 = pneg %p135
        %s213 = sand.u32 %s125, 1
        %s214 = scalar_lea.sflag [#allocation3], %s213
        %s215 = sand.u32 %s125, 1
        %s216 = smul.addr %s215, 4
        %s217 = scalar_lea.vmem [#allocation2], %s216
        %s218 = smul.u32 4, %s18
        %p219 = scmp.lt.s32.totalorder %s218, 7
        %s220 = scalar_select %p219, %s218, 7
        %s221 = scalar_lea.vmem %s0, %s220
        %s222 = smul.u32 4, %s18
        %s223 = smul.u32 4, %s18
        %p224 = scmp.lt.s32.totalorder %s223, 7
        %s225 = scalar_select %p224, %s223, 7
        %s226 = scalar_lea.vmem %s1, %s225
        %s227 = smul.u32 4, %s18
        %s228 = smul.u32 4, %s18
        %p229 = scmp.lt.s32.totalorder %s228, 7
        %s230 = scalar_select %p229, %s228, 7
        %s231 = scalar_lea.vmem %s2, %s230
        %s232 = smul.u32 4, %s18
        %s233 = smul.u32 4, %s18
        %v234 = vlaneseq
        %v235 = vshrl.u32 %v234, 7
        %v236 = vadd.s32 %v235, 8
        %v237 = vadd.s32 %v235, 16
        %v238 = vadd.s32 %v235, 24
        %v239 = vadd.s32 %v235, 32
        %v240 = vld [vmem:[%s221] sm:$0xf]
        %v241 = vlaneseq
        %v242 = vshrl.u32 %v241, 7
        %v243 = vsub.s32 0, %v242
        %v244 = vrot.slane %v240, %v243
        %v245 = vlaneseq
        %v246 = vshrl.u32 %v245, 7
        %v247 = vsub.s32 1, %v246
        %v248 = vrot.slane %v240, %v247
        %v249 = vlaneseq
        %v250 = vshrl.u32 %v249, 7
        %v251 = vsub.s32 2, %v250
        %v252 = vrot.slane %v240, %v251
        %v253 = vlaneseq
        %v254 = vshrl.u32 %v253, 7
        %v255 = vsub.s32 3, %v254
        %v256 = vrot.slane %v240, %v255
        %vm257 = vcmp.eq.s32.totalorder %v235, %v244
        %vm258 = vcmp.eq.s32.totalorder %v235, %v248
        %vm259 = vcmp.eq.s32.totalorder %v235, %v252
        %vm260 = vcmp.eq.s32.totalorder %v235, %v256
        %vm261 = vcmp.eq.s32.totalorder %v236, %v244
        %vm262 = vcmp.eq.s32.totalorder %v236, %v248
        %vm263 = vcmp.eq.s32.totalorder %v236, %v252
        %vm264 = vcmp.eq.s32.totalorder %v236, %v256
        %vm265 = vcmp.eq.s32.totalorder %v237, %v244
        %vm266 = vcmp.eq.s32.totalorder %v237, %v248
        %vm267 = vcmp.eq.s32.totalorder %v237, %v252
        %vm268 = vcmp.eq.s32.totalorder %v237, %v256
        %vm269 = vcmp.eq.s32.totalorder %v238, %v244
        %vm270 = vcmp.eq.s32.totalorder %v238, %v248
        %vm271 = vcmp.eq.s32.totalorder %v238, %v252
        %vm272 = vcmp.eq.s32.totalorder %v238, %v256
        %vm273 = vcmp.eq.s32.totalorder %v239, %v244
        %vm274 = vcmp.eq.s32.totalorder %v239, %v248
        %vm275 = vcmp.eq.s32.totalorder %v239, %v252
        %vm276 = vcmp.eq.s32.totalorder %v239, %v256
        %v277 = vld [vmem:[%s226] sm:$0xf]
        %v278 = vlaneseq
        %v279 = vshrl.u32 %v278, 7
        %v280 = vsub.s32 0, %v279
        %v281 = vrot.slane %v277, %v280
        %v282 = vlaneseq
        %v283 = vshrl.u32 %v282, 7
        %v284 = vsub.s32 1, %v283
        %v285 = vrot.slane %v277, %v284
        %v286 = vlaneseq
        %v287 = vshrl.u32 %v286, 7
        %v288 = vsub.s32 2, %v287
        %v289 = vrot.slane %v277, %v288
        %v290 = vlaneseq
        %v291 = vshrl.u32 %v290, 7
        %v292 = vsub.s32 3, %v291
        %v293 = vrot.slane %v277, %v292
        %vm294 = vcmp.eq.s32.totalorder %v235, %v281
        %vm295 = vcmp.eq.s32.totalorder %v235, %v285
        %vm296 = vcmp.eq.s32.totalorder %v235, %v289
        %vm297 = vcmp.eq.s32.totalorder %v235, %v293
        %vm298 = vcmp.eq.s32.totalorder %v236, %v281
        %vm299 = vcmp.eq.s32.totalorder %v236, %v285
        %vm300 = vcmp.eq.s32.totalorder %v236, %v289
        %vm301 = vcmp.eq.s32.totalorder %v236, %v293
        %vm302 = vcmp.eq.s32.totalorder %v237, %v281
        %vm303 = vcmp.eq.s32.totalorder %v237, %v285
        %vm304 = vcmp.eq.s32.totalorder %v237, %v289
        %vm305 = vcmp.eq.s32.totalorder %v237, %v293
        %vm306 = vcmp.eq.s32.totalorder %v238, %v281
        %vm307 = vcmp.eq.s32.totalorder %v238, %v285
        %vm308 = vcmp.eq.s32.totalorder %v238, %v289
        %vm309 = vcmp.eq.s32.totalorder %v238, %v293
        %vm310 = vcmp.eq.s32.totalorder %v239, %v281
        %vm311 = vcmp.eq.s32.totalorder %v239, %v285
        %vm312 = vcmp.eq.s32.totalorder %v239, %v289
        %vm313 = vcmp.eq.s32.totalorder %v239, %v293
        %vm314 = vmor %vm257, %vm294
        %vm315 = vmor %vm258, %vm295
        %vm316 = vmor %vm259, %vm296
        %vm317 = vmor %vm260, %vm297
        %vm318 = vmor %vm261, %vm298
        %vm319 = vmor %vm262, %vm299
        %vm320 = vmor %vm263, %vm300
        %vm321 = vmor %vm264, %vm301
        %vm322 = vmor %vm265, %vm302
        %vm323 = vmor %vm266, %vm303
        %vm324 = vmor %vm267, %vm304
        %vm325 = vmor %vm268, %vm305
        %vm326 = vmor %vm269, %vm306
        %vm327 = vmor %vm270, %vm307
        %vm328 = vmor %vm271, %vm308
        %vm329 = vmor %vm272, %vm309
        %vm330 = vmor %vm273, %vm310
        %vm331 = vmor %vm274, %vm311
        %vm332 = vmor %vm275, %vm312
        %vm333 = vmor %vm276, %vm313
        %v334 = vld [vmem:[%s231] sm:$0xf]
        %v335 = vlaneseq
        %v336 = vshrl.u32 %v335, 7
        %v337 = vsub.s32 0, %v336
        %v338 = vrot.slane %v334, %v337
        %v339 = vlaneseq
        %v340 = vshrl.u32 %v339, 7
        %v341 = vsub.s32 1, %v340
        %v342 = vrot.slane %v334, %v341
        %v343 = vlaneseq
        %v344 = vshrl.u32 %v343, 7
        %v345 = vsub.s32 2, %v344
        %v346 = vrot.slane %v334, %v345
        %v347 = vlaneseq
        %v348 = vshrl.u32 %v347, 7
        %v349 = vsub.s32 3, %v348
        %v350 = vrot.slane %v334, %v349
        %vm351 = vcmp.eq.s32.totalorder %v235, %v338
        %vm352 = vcmp.eq.s32.totalorder %v235, %v342
        %vm353 = vcmp.eq.s32.totalorder %v235, %v346
        %vm354 = vcmp.eq.s32.totalorder %v235, %v350
        %vm355 = vcmp.eq.s32.totalorder %v236, %v338
        %vm356 = vcmp.eq.s32.totalorder %v236, %v342
        %vm357 = vcmp.eq.s32.totalorder %v236, %v346
        %vm358 = vcmp.eq.s32.totalorder %v236, %v350
        %vm359 = vcmp.eq.s32.totalorder %v237, %v338
        %vm360 = vcmp.eq.s32.totalorder %v237, %v342
        %vm361 = vcmp.eq.s32.totalorder %v237, %v346
        %vm362 = vcmp.eq.s32.totalorder %v237, %v350
        %vm363 = vcmp.eq.s32.totalorder %v238, %v338
        %vm364 = vcmp.eq.s32.totalorder %v238, %v342
        %vm365 = vcmp.eq.s32.totalorder %v238, %v346
        %vm366 = vcmp.eq.s32.totalorder %v238, %v350
        %vm367 = vcmp.eq.s32.totalorder %v239, %v338
        %vm368 = vcmp.eq.s32.totalorder %v239, %v342
        %vm369 = vcmp.eq.s32.totalorder %v239, %v346
        %vm370 = vcmp.eq.s32.totalorder %v239, %v350
        %vm371 = vmor %vm314, %vm351
        %vm372 = vmor %vm315, %vm352
        %vm373 = vmor %vm316, %vm353
        %vm374 = vmor %vm317, %vm354
        %vm375 = vmor %vm318, %vm355
        %vm376 = vmor %vm319, %vm356
        %vm377 = vmor %vm320, %vm357
        %vm378 = vmor %vm321, %vm358
        %vm379 = vmor %vm322, %vm359
        %vm380 = vmor %vm323, %vm360
        %vm381 = vmor %vm324, %vm361
        %vm382 = vmor %vm325, %vm362
        %vm383 = vmor %vm326, %vm363
        %vm384 = vmor %vm327, %vm364
        %vm385 = vmor %vm328, %vm365
        %vm386 = vmor %vm329, %vm366
        %vm387 = vmor %vm330, %vm367
        %vm388 = vmor %vm331, %vm368
        %vm389 = vmor %vm332, %vm369
        %vm390 = vmor %vm333, %vm370
        %v391 = vsel %vm371, 1, 0
        %v392 = vsel %vm372, 1, 0
        %v393 = vsel %vm373, 1, 0
        %v394 = vsel %vm374, 1, 0
        %v395 = vsel %vm375, 1, 0
        %v396 = vsel %vm376, 1, 0
        %v397 = vsel %vm377, 1, 0
        %v398 = vsel %vm378, 1, 0
        %v399 = vsel %vm379, 1, 0
        %v400 = vsel %vm380, 1, 0
        %v401 = vsel %vm381, 1, 0
        %v402 = vsel %vm382, 1, 0
        %v403 = vsel %vm383, 1, 0
        %v404 = vsel %vm384, 1, 0
        %v405 = vsel %vm385, 1, 0
        %v406 = vsel %vm386, 1, 0
        %v407 = vsel %vm387, 1, 0
        %v408 = vsel %vm388, 1, 0
        %v409 = vsel %vm389, 1, 0
        %v410 = vsel %vm390, 1, 0
        %v411 = vcvt.s32.f32 %v391
        %v412 = vcvt.s32.f32 %v392
        %v413 = vcvt.s32.f32 %v393
        %v414 = vcvt.s32.f32 %v394
        %v415 = vcvt.s32.f32 %v395
        %v416 = vcvt.s32.f32 %v396
        %v417 = vcvt.s32.f32 %v397
        %v418 = vcvt.s32.f32 %v398
        %v419 = vcvt.s32.f32 %v399
        %v420 = vcvt.s32.f32 %v400
        %v421 = vcvt.s32.f32 %v401
        %v422 = vcvt.s32.f32 %v402
        %v423 = vcvt.s32.f32 %v403
        %v424 = vcvt.s32.f32 %v404
        %v425 = vcvt.s32.f32 %v405
        %v426 = vcvt.s32.f32 %v406
        %v427 = vcvt.s32.f32 %v407
        %v428 = vcvt.s32.f32 %v408
        %v429 = vcvt.s32.f32 %v409
        %v430 = vcvt.s32.f32 %v410
        %v431 = vld [vmem:[%s3] sm:$0xff]
        %v432 = vld [vmem:[%s3 + $0x8] sm:$0xff]
        %v433 = vld [vmem:[%s3 + $0x10] sm:$0xff]
        %v434 = vld [vmem:[%s3 + $0x18] sm:$0xff]
        %v435 = vld [vmem:[%s3 + $0x20] sm:$0xff]
        %v436 = vld [vmem:[%s3 + $0x28] sm:$0xff]
        %v437 = vld [vmem:[%s3 + $0x30] sm:$0xff]
        %v438 = vld [vmem:[%s3 + $0x38] sm:$0xff]
        %v439 = vld [vmem:[%s3 + $0x40] sm:$0xff]
        %v440 = vld [vmem:[%s3 + $0x48] sm:$0xff]
        %v441 = vld [vmem:[%s3 + $0x50] sm:$0xff]
        %v442 = vld [vmem:[%s3 + $0x58] sm:$0xff]
        %v443 = vld [vmem:[%s3 + $0x60] sm:$0xff]
        %v444 = vld [vmem:[%s3 + $0x68] sm:$0xff]
        %v445 = vld [vmem:[%s3 + $0x70] sm:$0xff]
        %v446 = vld [vmem:[%s3 + $0x78] sm:$0xff]
        %v447 = vld [vmem:[%s3 + $0x80] sm:$0xff]
        %vm448 = vcmask 293888
        %v450 = vsel %vm448, %v431, 0
        %v453 = vsel %vm448, %v432, 0
        %v456 = vsel %vm448, %v433, 0
        %v459 = vsel %vm448, %v434, 0
        %v462 = vsel %vm448, %v435, 0
        %v465 = vsel %vm448, %v436, 0
        %v468 = vsel %vm448, %v437, 0
        %v471 = vsel %vm448, %v438, 0
        %v474 = vsel %vm448, %v439, 0
        %v477 = vsel %vm448, %v440, 0
        %v480 = vsel %vm448, %v441, 0
        %v483 = vsel %vm448, %v442, 0
        %v486 = vsel %vm448, %v443, 0
        %v489 = vsel %vm448, %v444, 0
        %v492 = vsel %vm448, %v445, 0
        %v495 = vsel %vm448, %v446, 0
        %v498 = vsel %vm448, %v447, 0
        %vm500 = vcmask 1043456
        %v502 = vsel %vm500, %v427, 0
        %v505 = vsel %vm500, %v428, 0
        %v508 = vsel %vm500, %v429, 0
        %v511 = vsel %vm500, %v430, 0
        %513 = vmatprep.subr.mxu0 %v412
        %514 = vmatpush1.msra.mxu0 %v411
        %515 = vmatprep.subr.mxu0 %v416
        %516 = vmatpush1.msra.mxu0 %v415
        %517 = vmatprep.subr.mxu0 %v420
        %518 = vmatpush1.msra.mxu0 %v419
        %519 = vmatprep.subr.mxu0 %v424
        %520 = vmatpush1.msra.mxu0 %v423
        %521 = vmatprep.subr.mxu0 %v505
        %522 = vmatpush1.msra.mxu0 %v502
        %523 = vmatprep.subr.mxu0 0.0
        %524 = vmatpush1.msra.mxu0 0.0
        %525 = vmatprep.subr.mxu0 0.0
        %526 = vmatpush1.msra.mxu0 0.0
        %527 = vmatprep.subr.mxu0 0.0
        %528 = vmatpush1.msra.mxu0 0.0
        %529 = vmatprep.subr.mxu0 0.0
        %530 = vmatpush1.msra.mxu0 0.0
        %531 = vmatprep.subr.mxu0 0.0
        %532 = vmatpush1.msra.mxu0 0.0
        %533 = vmatprep.subr.mxu0 0.0
        %534 = vmatpush1.msra.mxu0 0.0
        %535 = vmatprep.subr.mxu0 0.0
        %536 = vmatpush1.msra.mxu0 0.0
        %537 = vmatprep.subr.mxu0 0.0
        %538 = vmatpush1.msra.mxu0 0.0
        %539 = vmatprep.subr.mxu0 0.0
        %540 = vmatpush1.msra.mxu0 0.0
        %541 = vmatprep.subr.mxu0 0.0
        %542 = vmatpush1.msra.mxu0 0.0
        %543 = vmatprep.subr.mxu0 0.0
        %544 = vmatpush1.msra.mxu0 0.0
        %545 = vmatprep.subr.mxu0 0.0
        %546 = vmatpush1.msra.mxu0 0.0
        %547 = vmatprep.subr.mxu0 0.0
        %548 = vmatpush1.msra.mxu0 0.0
        %549 = vmatprep.subr.mxu0 0.0
        %550 = vmatpush1.msra.mxu0 0.0
        %551 = vmatprep.subr.mxu0 0.0
        %552 = vmatpush1.msra.mxu0 0.0
        %553 = vmatprep.subr.mxu0 0.0
        %554 = vmatpush1.msra.mxu0 0.0
        %555 = vmatprep.subr.mxu0 0.0
        %556 = vmatpush1.msra.mxu0 0.0
        %557 = vmatprep.subr.mxu0 0.0
        %558 = vmatpush1.msra.mxu0 0.0
        %559 = vmatprep.subr.mxu0 0.0
        %560 = vmatpush1.msra.mxu0 0.0
        %561 = vmatprep.subr.mxu0 0.0
        %562 = vmatpush1.msra.mxu0 0.0
        %563 = vmatprep.subr.mxu0 0.0
        %564 = vmatpush1.msra.mxu0 0.0
        %565 = vmatprep.subr.mxu0 0.0
        %566 = vmatpush1.msra.mxu0 0.0
        %567 = vmatprep.subr.mxu0 0.0
        %568 = vmatpush1.msra.mxu0 0.0
        %569 = vmatprep.subr.mxu0 0.0
        %570 = vmatpush1.msra.mxu0 0.0
        %571 = vmatprep.subr.mxu0 0.0
        %572 = vmatpush1.msra.mxu0 0.0
        %573 = vmatprep.subr.mxu0 0.0
        %574 = vmatpush1.msra.mxu0 0.0
        %575 = vmatprep.subr.mxu0 0.0
        %576 = vmatpush1.msra.mxu0 0.0
        %577 = vmatprep.mubr.f32.mxu0 0.0
        %578 = vmatmul.mubr.f32.gmra.mrb[0].mxu0 %v450
        %v579 = vpop.f32.mrb[0].mxu0
        %v580 = vadd.f32 0.0, %v579
        %v581 = vpop.f32.mrb[0].mxu0
        %v582 = vadd.f32 0.0, %v581
        %583 = vmatprep.mubr.f32.mxu0 0.0
        %584 = vmatmul.mubr.f32.gmra.mrb[0].mxu0 %v453
        %v585 = vpop.f32.mrb[0].mxu0
        %v586 = vadd.f32 0.0, %v585
        %v587 = vpop.f32.mrb[0].mxu0
        %v588 = vadd.f32 0.0, %v587
        %589 = vmatprep.mubr.f32.mxu0 0.0
        %590 = vmatmul.mubr.f32.gmra.mrb[0].mxu0 %v456
        %v591 = vpop.f32.mrb[0].mxu0
        %v592 = vadd.f32 0.0, %v591
        %v593 = vpop.f32.mrb[0].mxu0
        %v594 = vadd.f32 0.0, %v593
        %595 = vmatprep.mubr.f32.mxu0 0.0
        %596 = vmatmul.mubr.f32.gmra.mrb[0].mxu0 %v459
        %v597 = vpop.f32.mrb[0].mxu0
        %v598 = vadd.f32 0.0, %v597
        %v599 = vpop.f32.mrb[0].mxu0
        %v600 = vadd.f32 0.0, %v599
        %601 = vmatprep.mubr.f32.mxu0 0.0
        %602 = vmatmul.mubr.f32.gmra.mrb[0].mxu0 %v462
        %v603 = vpop.f32.mrb[0].mxu0
        %v604 = vadd.f32 0.0, %v603
        %v605 = vpop.f32.mrb[0].mxu0
        %v606 = vadd.f32 0.0, %v605
        %607 = vmatprep.mubr.f32.mxu0 0.0
        %608 = vmatmul.mubr.f32.gmra.mrb[0].mxu0 %v465
        %v609 = vpop.f32.mrb[0].mxu0
        %v610 = vadd.f32 0.0, %v609
        %v611 = vpop.f32.mrb[0].mxu0
        %v612 = vadd.f32 0.0, %v611
        %613 = vmatprep.mubr.f32.mxu0 0.0
        %614 = vmatmul.mubr.f32.gmra.mrb[0].mxu0 %v468
        %v615 = vpop.f32.mrb[0].mxu0
        %v616 = vadd.f32 0.0, %v615
        %v617 = vpop.f32.mrb[0].mxu0
        %v618 = vadd.f32 0.0, %v617
        %619 = vmatprep.mubr.f32.mxu0 0.0
        %620 = vmatmul.mubr.f32.gmra.mrb[0].mxu0 %v471
        %v621 = vpop.f32.mrb[0].mxu0
        %v622 = vadd.f32 0.0, %v621
        %v623 = vpop.f32.mrb[0].mxu0
        %v624 = vadd.f32 0.0, %v623
        %625 = vmatprep.mubr.f32.mxu0 0.0
        %626 = vmatmul.mubr.f32.gmra.mrb[0].mxu0 %v474
        %v627 = vpop.f32.mrb[0].mxu0
        %v628 = vadd.f32 0.0, %v627
        %v629 = vpop.f32.mrb[0].mxu0
        %v630 = vadd.f32 0.0, %v629
        %631 = vmatprep.mubr.f32.mxu0 0.0
        %632 = vmatmul.mubr.f32.gmra.mrb[0].mxu0 %v477
        %v633 = vpop.f32.mrb[0].mxu0
        %v634 = vadd.f32 0.0, %v633
        %v635 = vpop.f32.mrb[0].mxu0
        %v636 = vadd.f32 0.0, %v635
        %637 = vmatprep.mubr.f32.mxu0 0.0
        %638 = vmatmul.mubr.f32.gmra.mrb[0].mxu0 %v480
        %v639 = vpop.f32.mrb[0].mxu0
        %v640 = vadd.f32 0.0, %v639
        %v641 = vpop.f32.mrb[0].mxu0
        %v642 = vadd.f32 0.0, %v641
        %643 = vmatprep.mubr.f32.mxu0 0.0
        %644 = vmatmul.mubr.f32.gmra.mrb[0].mxu0 %v483
        %v645 = vpop.f32.mrb[0].mxu0
        %v646 = vadd.f32 0.0, %v645
        %v647 = vpop.f32.mrb[0].mxu0
        %v648 = vadd.f32 0.0, %v647
        %649 = vmatprep.mubr.f32.mxu0 0.0
        %650 = vmatmul.mubr.f32.gmra.mrb[0].mxu0 %v486
        %v651 = vpop.f32.mrb[0].mxu0
        %v652 = vadd.f32 0.0, %v651
        %v653 = vpop.f32.mrb[0].mxu0
        %v654 = vadd.f32 0.0, %v653
        %655 = vmatprep.mubr.f32.mxu0 0.0
        %656 = vmatmul.mubr.f32.gmra.mrb[0].mxu0 %v489
        %v657 = vpop.f32.mrb[0].mxu0
        %v658 = vadd.f32 0.0, %v657
        %v659 = vpop.f32.mrb[0].mxu0
        %v660 = vadd.f32 0.0, %v659
        %661 = vmatprep.mubr.f32.mxu0 0.0
        %662 = vmatmul.mubr.f32.gmra.mrb[0].mxu0 %v492
        %v663 = vpop.f32.mrb[0].mxu0
        %v664 = vadd.f32 0.0, %v663
        %v665 = vpop.f32.mrb[0].mxu0
        %v666 = vadd.f32 0.0, %v665
        %667 = vmatprep.mubr.f32.mxu0 0.0
        %668 = vmatmul.mubr.f32.gmra.mrb[0].mxu0 %v495
        %v669 = vpop.f32.mrb[0].mxu0
        %v670 = vadd.f32 0.0, %v669
        %v671 = vpop.f32.mrb[0].mxu0
        %v672 = vadd.f32 0.0, %v671
        %673 = vmatprep.mubr.f32.mxu0 0.0
        %674 = vmatmul.mubr.f32.gmra.mrb[0].mxu0 %v498
        %v675 = vpop.f32.mrb[0].mxu0
        %v676 = vadd.f32 0.0, %v675
        %v677 = vpop.f32.mrb[0].mxu0
        %v678 = vadd.f32 0.0, %v677
        %679 = vdwg.mxu0
        %680 = vmatprep.subr.mxu0 %v414
        %681 = vmatpush1.msra.mxu0 %v413
        %682 = vmatprep.subr.mxu0 %v418
        %683 = vmatpush1.msra.mxu0 %v417
        %684 = vmatprep.subr.mxu0 %v422
        %685 = vmatpush1.msra.mxu0 %v421
        %686 = vmatprep.subr.mxu0 %v426
        %687 = vmatpush1.msra.mxu0 %v425
        %688 = vmatprep.subr.mxu0 %v511
        %689 = vmatpush1.msra.mxu0 %v508
        %690 = vmatprep.subr.mxu0 0.0
        %691 = vmatpush1.msra.mxu0 0.0
        %692 = vmatprep.subr.mxu0 0.0
        %693 = vmatpush1.msra.mxu0 0.0
        %694 = vmatprep.subr.mxu0 0.0
        %695 = vmatpush1.msra.mxu0 0.0
        %696 = vmatprep.subr.mxu0 0.0
        %697 = vmatpush1.msra.mxu0 0.0
        %698 = vmatprep.subr.mxu0 0.0
        %699 = vmatpush1.msra.mxu0 0.0
        %700 = vmatprep.subr.mxu0 0.0
        %701 = vmatpush1.msra.mxu0 0.0
        %702 = vmatprep.subr.mxu0 0.0
        %703 = vmatpush1.msra.mxu0 0.0
        %704 = vmatprep.subr.mxu0 0.0
        %705 = vmatpush1.msra.mxu0 0.0
        %706 = vmatprep.subr.mxu0 0.0
        %707 = vmatpush1.msra.mxu0 0.0
        %708 = vmatprep.subr.mxu0 0.0
        %709 = vmatpush1.msra.mxu0 0.0
        %710 = vmatprep.subr.mxu0 0.0
        %711 = vmatpush1.msra.mxu0 0.0
        %712 = vmatprep.subr.mxu0 0.0
        %713 = vmatpush1.msra.mxu0 0.0
        %714 = vmatprep.subr.mxu0 0.0
        %715 = vmatpush1.msra.mxu0 0.0
        %716 = vmatprep.subr.mxu0 0.0
        %717 = vmatpush1.msra.mxu0 0.0
        %718 = vmatprep.subr.mxu0 0.0
        %719 = vmatpush1.msra.mxu0 0.0
        %720 = vmatprep.subr.mxu0 0.0
        %721 = vmatpush1.msra.mxu0 0.0
        %722 = vmatprep.subr.mxu0 0.0
        %723 = vmatpush1.msra.mxu0 0.0
        %724 = vmatprep.subr.mxu0 0.0
        %725 = vmatpush1.msra.mxu0 0.0
        %726 = vmatprep.subr.mxu0 0.0
        %727 = vmatpush1.msra.mxu0 0.0
        %728 = vmatprep.subr.mxu0 0.0
        %729 = vmatpush1.msra.mxu0 0.0
        %730 = vmatprep.subr.mxu0 0.0
        %731 = vmatpush1.msra.mxu0 0.0
        %732 = vmatprep.subr.mxu0 0.0
        %733 = vmatpush1.msra.mxu0 0.0
        %734 = vmatprep.subr.mxu0 0.0
        %735 = vmatpush1.msra.mxu0 0.0
        %736 = vmatprep.subr.mxu0 0.0
        %737 = vmatpush1.msra.mxu0 0.0
        %738 = vmatprep.subr.mxu0 0.0
        %739 = vmatpush1.msra.mxu0 0.0
        %740 = vmatprep.subr.mxu0 0.0
        %741 = vmatpush1.msra.mxu0 0.0
        %742 = vmatprep.subr.mxu0 0.0
        %743 = vmatpush1.msra.mxu0 0.0
        %744 = vmatprep.mubr.f32.mxu0 0.0
        %745 = vmatmul.mubr.f32.gmra.mrb[0].mxu0 %v450
        %v746 = vpop.f32.mrb[0].mxu0
        %v747 = vadd.f32 0.0, %v746
        %v748 = vpop.f32.mrb[0].mxu0
        %v749 = vadd.f32 0.0, %v748
        %750 = vmatprep.mubr.f32.mxu0 0.0
        %751 = vmatmul.mubr.f32.gmra.mrb[0].mxu0 %v453
        %v752 = vpop.f32.mrb[0].mxu0
        %v753 = vadd.f32 0.0, %v752
        %v754 = vpop.f32.mrb[0].mxu0
        %v755 = vadd.f32 0.0, %v754
        %756 = vmatprep.mubr.f32.mxu0 0.0
        %757 = vmatmul.mubr.f32.gmra.mrb[0].mxu0 %v456
        %v758 = vpop.f32.mrb[0].mxu0
        %v759 = vadd.f32 0.0, %v758
        %v760 = vpop.f32.mrb[0].mxu0
        %v761 = vadd.f32 0.0, %v760
        %762 = vmatprep.mubr.f32.mxu0 0.0
        %763 = vmatmul.mubr.f32.gmra.mrb[0].mxu0 %v459
        %v764 = vpop.f32.mrb[0].mxu0
        %v765 = vadd.f32 0.0, %v764
        %v766 = vpop.f32.mrb[0].mxu0
        %v767 = vadd.f32 0.0, %v766
        %768 = vmatprep.mubr.f32.mxu0 0.0
        %769 = vmatmul.mubr.f32.gmra.mrb[0].mxu0 %v462
        %v770 = vpop.f32.mrb[0].mxu0
        %v771 = vadd.f32 0.0, %v770
        %v772 = vpop.f32.mrb[0].mxu0
        %v773 = vadd.f32 0.0, %v772
        %774 = vmatprep.mubr.f32.mxu0 0.0
        %775 = vmatmul.mubr.f32.gmra.mrb[0].mxu0 %v465
        %v776 = vpop.f32.mrb[0].mxu0
        %v777 = vadd.f32 0.0, %v776
        %v778 = vpop.f32.mrb[0].mxu0
        %v779 = vadd.f32 0.0, %v778
        %780 = vmatprep.mubr.f32.mxu0 0.0
        %781 = vmatmul.mubr.f32.gmra.mrb[0].mxu0 %v468
        %v782 = vpop.f32.mrb[0].mxu0
        %v783 = vadd.f32 0.0, %v782
        %v784 = vpop.f32.mrb[0].mxu0
        %v785 = vadd.f32 0.0, %v784
        %786 = vmatprep.mubr.f32.mxu0 0.0
        %787 = vmatmul.mubr.f32.gmra.mrb[0].mxu0 %v471
        %v788 = vpop.f32.mrb[0].mxu0
        %v789 = vadd.f32 0.0, %v788
        %v790 = vpop.f32.mrb[0].mxu0
        %v791 = vadd.f32 0.0, %v790
        %792 = vmatprep.mubr.f32.mxu0 0.0
        %793 = vmatmul.mubr.f32.gmra.mrb[0].mxu0 %v474
        %v794 = vpop.f32.mrb[0].mxu0
        %v795 = vadd.f32 0.0, %v794
        %v796 = vpop.f32.mrb[0].mxu0
        %v797 = vadd.f32 0.0, %v796
        %798 = vmatprep.mubr.f32.mxu0 0.0
        %799 = vmatmul.mubr.f32.gmra.mrb[0].mxu0 %v477
        %v800 = vpop.f32.mrb[0].mxu0
        %v801 = vadd.f32 0.0, %v800
        %v802 = vpop.f32.mrb[0].mxu0
        %v803 = vadd.f32 0.0, %v802
        %804 = vmatprep.mubr.f32.mxu0 0.0
        %805 = vmatmul.mubr.f32.gmra.mrb[0].mxu0 %v480
        %v806 = vpop.f32.mrb[0].mxu0
        %v807 = vadd.f32 0.0, %v806
        %v808 = vpop.f32.mrb[0].mxu0
        %v809 = vadd.f32 0.0, %v808
        %810 = vmatprep.mubr.f32.mxu0 0.0
        %811 = vmatmul.mubr.f32.gmra.mrb[0].mxu0 %v483
        %v812 = vpop.f32.mrb[0].mxu0
        %v813 = vadd.f32 0.0, %v812
        %v814 = vpop.f32.mrb[0].mxu0
        %v815 = vadd.f32 0.0, %v814
        %816 = vmatprep.mubr.f32.mxu0 0.0
        %817 = vmatmul.mubr.f32.gmra.mrb[0].mxu0 %v486
        %v818 = vpop.f32.mrb[0].mxu0
        %v819 = vadd.f32 0.0, %v818
        %v820 = vpop.f32.mrb[0].mxu0
        %v821 = vadd.f32 0.0, %v820
        %822 = vmatprep.mubr.f32.mxu0 0.0
        %823 = vmatmul.mubr.f32.gmra.mrb[0].mxu0 %v489
        %v824 = vpop.f32.mrb[0].mxu0
        %v825 = vadd.f32 0.0, %v824
        %v826 = vpop.f32.mrb[0].mxu0
        %v827 = vadd.f32 0.0, %v826
        %828 = vmatprep.mubr.f32.mxu0 0.0
        %829 = vmatmul.mubr.f32.gmra.mrb[0].mxu0 %v492
        %v830 = vpop.f32.mrb[0].mxu0
        %v831 = vadd.f32 0.0, %v830
        %v832 = vpop.f32.mrb[0].mxu0
        %v833 = vadd.f32 0.0, %v832
        %834 = vmatprep.mubr.f32.mxu0 0.0
        %835 = vmatmul.mubr.f32.gmra.mrb[0].mxu0 %v495
        %v836 = vpop.f32.mrb[0].mxu0
        %v837 = vadd.f32 0.0, %v836
        %v838 = vpop.f32.mrb[0].mxu0
        %v839 = vadd.f32 0.0, %v838
        %840 = vmatprep.mubr.f32.mxu0 0.0
        %841 = vmatmul.mubr.f32.gmra.mrb[0].mxu0 %v498
        %v842 = vpop.f32.mrb[0].mxu0
        %v843 = vadd.f32 0.0, %v842
        %v844 = vpop.f32.mrb[0].mxu0
        %v845 = vadd.f32 0.0, %v844
        %846 = vdwg.mxu0
        %v847 = vmul.f32 %v628, %v580
        %v848 = vmul.f32 %v630, %v582
        %v849 = vmul.f32 %v795, %v747
        %v850 = vmul.f32 %v797, %v749
        %v851 = vmul.f32 %v634, %v586
        %v852 = vmul.f32 %v636, %v588
        %v853 = vmul.f32 %v801, %v753
        %v854 = vmul.f32 %v803, %v755
        %v855 = vmul.f32 %v640, %v592
        %v856 = vmul.f32 %v642, %v594
        %v857 = vmul.f32 %v807, %v759
        %v858 = vmul.f32 %v809, %v761
        %v859 = vmul.f32 %v646, %v598
        %v860 = vmul.f32 %v648, %v600
        %v861 = vmul.f32 %v813, %v765
        %v862 = vmul.f32 %v815, %v767
        %v863 = vmul.f32 %v652, %v604
        %v864 = vmul.f32 %v654, %v606
        %v865 = vmul.f32 %v819, %v771
        %v866 = vmul.f32 %v821, %v773
        %v867 = vmul.f32 %v658, %v610
        %v868 = vmul.f32 %v660, %v612
        %v869 = vmul.f32 %v825, %v777
        %v870 = vmul.f32 %v827, %v779
        %v871 = vmul.f32 %v664, %v616
        %v872 = vmul.f32 %v666, %v618
        %v873 = vmul.f32 %v831, %v783
        %v874 = vmul.f32 %v833, %v785
        %v875 = vmul.f32 %v670, %v622
        %v876 = vmul.f32 %v672, %v624
        %v877 = vmul.f32 %v837, %v789
        %v878 = vmul.f32 %v839, %v791
        %v879 = vadd.f32 %v847, %v851
        %v880 = vadd.f32 %v879, %v855
        %v881 = vadd.f32 %v880, %v859
        %v882 = vadd.f32 %v881, %v863
        %v883 = vadd.f32 %v882, %v867
        %v884 = vadd.f32 %v883, %v871
        %v885 = vadd.f32 %v884, %v875
        %v886 = vadd.f32 %v848, %v852
        %v887 = vadd.f32 %v886, %v856
        %v888 = vadd.f32 %v887, %v860
        %v889 = vadd.f32 %v888, %v864
        %v890 = vadd.f32 %v889, %v868
        %v891 = vadd.f32 %v890, %v872
        %v892 = vadd.f32 %v891, %v876
        %v893 = vadd.f32 %v849, %v853
        %v894 = vadd.f32 %v893, %v857
        %v895 = vadd.f32 %v894, %v861
        %v896 = vadd.f32 %v895, %v865
        %v897 = vadd.f32 %v896, %v869
        %v898 = vadd.f32 %v897, %v873
        %v899 = vadd.f32 %v898, %v877
        %v900 = vadd.f32 %v850, %v854
        %v901 = vadd.f32 %v900, %v858
        %v902 = vadd.f32 %v901, %v862
        %v903 = vadd.f32 %v902, %v866
        %v904 = vadd.f32 %v903, %v870
        %v905 = vadd.f32 %v904, %v874
        %v906 = vadd.f32 %v905, %v878
        %v907 = vxor.u32 %v885, 2147483648
        %v908 = vxor.u32 %v892, 2147483648
        %v909 = vxor.u32 %v899, 2147483648
        %v910 = vxor.u32 %v906, 2147483648
        %v911 = vmul.f32 %v907, 1.442695
        %v912 = vpow.pop %v911
        %v913 = vmul.f32 %v908, 1.442695
        %v914 = vpow.pop %v913
        %v915 = vmul.f32 %v909, 1.442695
        %v916 = vpow.pop %v915
        %v917 = vmul.f32 %v910, 1.442695
        %v918 = vpow.pop %v917
        %v919 = vadd.f32 %v912, 1.0
        %v920 = vadd.f32 %v914, 1.0
        %v921 = vadd.f32 %v916, 1.0
        %v922 = vadd.f32 %v918, 1.0
        %v923 = vrcp.pop %v919
        %v924 = vmul.f32 1.0, %v923
        %v925 = vrcp.pop %v920
        %v926 = vmul.f32 1.0, %v925
        %v927 = vrcp.pop %v921
        %v928 = vmul.f32 1.0, %v927
        %v929 = vrcp.pop %v922
        %v930 = vmul.f32 1.0, %v929
        %v931 = vmul.f32 %v676, %v924
        %v932 = vmul.f32 %v678, %v926
        %v933 = vmul.f32 %v843, %v928
        %v934 = vmul.f32 %v845, %v930
        %v935 = vrot.slane %v931, 4
        %v936 = vadd.f32 %v931, %v935
        %v937 = vrot.slane %v936, 2
        %v938 = vadd.f32 %v936, %v937
        %v939 = vrot.slane %v938, 1
        %v940 = vadd.f32 %v938, %v939
        %v941 = vrot.slane %v932, 4
        %v942 = vadd.f32 %v932, %v941
        %v943 = vrot.slane %v942, 2
        %v944 = vadd.f32 %v942, %v943
        %v945 = vrot.slane %v944, 1
        %v946 = vadd.f32 %v944, %v945
        %v947 = vrot.slane %v933, 4
        %v948 = vadd.f32 %v933, %v947
        %v949 = vrot.slane %v948, 2
        %v950 = vadd.f32 %v948, %v949
        %v951 = vrot.slane %v950, 1
        %v952 = vadd.f32 %v950, %v951
        %v953 = vrot.slane %v934, 4
        %v954 = vadd.f32 %v934, %v953
        %v955 = vrot.slane %v954, 2
        %v956 = vadd.f32 %v954, %v955
        %v957 = vrot.slane %v956, 1
        %v958 = vadd.f32 %v956, %v957
        %v963 = vcombine.low %v940, %v946
        %v964 = vcombine.low %v952, %v958
        %v966 = vunpack.c.l.s4 1966171168
        %v967 = vunpack.c.0.s8 %v966
        %v968 = vlaneseq
        %v969 = vshrl.u32 %v968, 7
        %v970 = vsub.s32 %v967, %v969
        %v971 = vrot.slane %v963, %v970
        %v973 = vunpack.c.l.s4 1966171168
        %v974 = vunpack.c.0.s8 %v973
        %v975 = vlaneseq
        %v976 = vshrl.u32 %v975, 7
        %v977 = vsub.s32 %v974, %v976
        %v978 = vrot.slane %v964, %v977
        %v979 = vcombine.low %v971, %v978
        %v981 = vunpack.c.l.s4 1966171168
        %v982 = vunpack.c.0.s8 %v981
        %v983 = vlaneseq
        %v984 = vshrl.u32 %v983, 7
        %v985 = vsub.s32 %v982, %v984
        %v986 = vrot.slane %v979, %v985
        %v988 = vlaneseq
        %vm989 = vcmp.ge.s32.totalorder %v988, 0
        %vm990 = vcmp.lt.s32.totalorder %v988, 512
        %vm991 = vmand %vm989, %vm990
        %992 = vst.msk [vmem:[%s217] sm:$0xf] %vm991, %v986
        %s993 = sand.u32 %s125, 1
        %s994 = scalar_lea.sflag [#allocation3], %s993
        %s995 = sand.u32 %s125, 1
        %s996 = smul.addr %s995, 4
        %s997 = scalar_lea.vmem [#allocation2], %s996
        // Predicated region
        $region37: #{tpu_custom_call.1} parent=35 // pred_check
          %p998 = pneg %p135
        $region38: #{tpu_custom_call.1} parent=35 // pred_check_branch
          %1000 = sbr.rel (%p998) target = $region40
        $region39: #{tpu_custom_call.1} parent=35 // pred_region
          %s1001 = smul.u32 4, %s18
          %s1003 = ssub.s32 64, 64
          %1004 = vsyncadd %s994, %s1003
          %s1005 = smul.addr %s1001, 16
          %s1006 = scalar_lea.hbm %s4, %s1005
          %s1008 = sshll.u32 %s997, 4
          %s1009 = int_to_ptr.vmem [resolvable:$true] %s1008
          %1011 = dma.vmem_to_hbm [thread:$0]  %s1009, 64, %s1006, %s994
        $region40: #{tpu_custom_call.1} parent=35 // pred_fallthru
          _
      $region36: #{tpu_custom_call.1} parent=5 // pred_fallthru
        _
      %p1012 = scmp.le.s32.totalorder 2, %s13
      // Predicated region
      $region41: #{tpu_custom_call.1} parent=5 // pred_check
        %p1013 = pneg %p1012
      $region42: #{tpu_custom_call.1} parent=5 // pred_check_branch
        %1015 = sbr.rel (%p1013) target = $region44
      $region43: #{tpu_custom_call.1} parent=5 // pred_region
        %s1016 = ssub.s32 %s13, 2
        // Predicated region
        $region45: #{tpu_custom_call.1} parent=43 // pred_check
          %p1017 = pneg %p141
        $region46: #{tpu_custom_call.1} parent=43 // pred_check_branch
          %1019 = sbr.rel (%p1017) target = $region48
        $region47: #{tpu_custom_call.1} parent=43 // pred_region
          %s1020 = sand.u32 %s126, 1
          %s1021 = scalar_lea.sflag [#allocation3], %s1020
          %s1022 = sand.u32 %s126, 1
          %s1023 = smul.addr %s1022, 4
          %s1024 = scalar_lea.vmem [#allocation2], %s1023
          %1025 = dma.done %s1021, 64
        $region48: #{tpu_custom_call.1} parent=43 // pred_fallthru
          _
      $region44: #{tpu_custom_call.1} parent=5 // pred_fallthru
        _
    $region6: #{tpu_custom_call.1} parent=1 // loop_footer
      %s17 = sadd.s32 1, %s13
    $region7: #{tpu_custom_call.1} parent=1 // loop_footer_branch
      %12 = sbr.rel target = $region3
    $region8: #{tpu_custom_call.1} parent=1 // loop_exit
      _
    %1026 = vsyncpa [#allocation3], 1
    %s1027 = scalar_lea.sflag [#allocation3], 1
    %1028 = vsyncpa %s1027, 1

</llo_original>
